<compile_context>
chip_gen: v5e
topology: v5e:2x2
jax: 0.10.0
libtpu: 0.0.40
codegen_flags: <defaults>
</compile_context>

<pallas_src>
import functools

import jax
import jax.numpy as jnp
import numpy as np
from jax.experimental import pallas as pl
from jax.experimental.pallas import tpu as pltpu


def _conv_block_kernel(x_ref, w1_ref, b1_ref, w2_ref, b2_ref, out_ref, *,
                       NB, H, W, C_IN, C_OUT):
    """Processes NB images per grid step, everything lane-flattened.

    x_ref  : (NB, H, W*C_IN)        input block (channels-last, (W,C) on lanes), f32
    w1_ref : (W*C_IN,  3*W*C_OUT)   conv1 banded weight, BN scale folded in, bf16
    w2_ref : (W*C_OUT, 3*W*C_OUT)   conv2 banded weight, BN scale folded in, bf16
    b*_ref : (1, W*C_OUT)           fused BN/bias shift, f32
    out_ref: (NB, H, W*C_OUT)       lane-dense output block, f32
    """
    f32 = jnp.float32
    bf16 = jnp.bfloat16
    M = NB * H
    NL = W * C_OUT

    # Per-image row index as an (M, 1) column; jnp.where broadcasts it over the NL
    # lanes, so the edge masks cost narrow VPU ops instead of full (M, NL) ones.
    # The `% H` also kills cross-image leakage of the rolls when NB > 1.
    h_idx = jax.lax.broadcasted_iota(jnp.int32, (M, 1), 0) % H
    not_top = h_idx != 0          # row has a valid row above it (dy=0 band)
    not_bot = h_idx != H - 1      # row has a valid row below it (dy=2 band)

    def conv3x3(xrow_bf16, w_ref):
        # One bf16 MXU matmul with f32 accumulation; the W zero padding is folded
        # into the band structure of w_ref, and the BN scale is pre-folded into its
        # columns, so no padded activations and no epilogue scale multiply.
        y = jnp.dot(xrow_bf16, w_ref[...], preferred_element_type=f32)   # (M, 3*NL)
        y_up, y_mid, y_dn = y[:, :NL], y[:, NL:2 * NL], y[:, 2 * NL:]
        # dy=0 taps: output row h reads input row h-1 -> shift rows down by 1.
        top = jnp.where(not_top, pltpu.roll(y_up, 1, axis=0), 0.0)
        # dy=2 taps: output row h reads input row h+1 -> shift rows up by 1.
        bot = jnp.where(not_bot, pltpu.roll(y_dn, M - 1, axis=0), 0.0)
        return y_mid + top + bot

    x = x_ref[...].reshape(M, W * C_IN).astype(bf16)
    a1 = jnp.maximum(conv3x3(x, w1_ref) + b1_ref[...], 0.0)
    a2 = jnp.maximum(conv3x3(a1.astype(bf16), w2_ref) + b2_ref[...], 0.0)
    out_ref[...] = a2.reshape(NB, H, NL).astype(out_ref.dtype)


def _band_weight(w_hwio, W):
    """(3, 3, Cin, Cout) HWIO -> (W*Cin, 3*W*Cout) block-banded matrix.

    Column block dy applies kernel row dy along the W axis, with the W zero padding
    folded into the band structure, so a full 3x3 conv becomes one matmul plus +-1
    row shifts of the three column blocks.
    """
    _, _, cin, cout = w_hwio.shape
    sel = np.zeros((3, W, W), np.float32)     # sel[dx, wp, wo] = 1 iff wp == wo + dx - 1
    for dx in range(3):
        for wo in range(W):
            wp = wo + dx - 1
            if 0 <= wp < W:
                sel[dx, wp, wo] = 1.0
    wb = jnp.einsum("xpw,yxio->piywo", jnp.asarray(sel), w_hwio)  # (W,Cin,3,W,Cout)
    return wb.reshape(W * cin, 3 * W * cout)


def _pick_nb(N, H, max_rows=256):
    """Largest divisor of N keeping nb*H <= max_rows.

    Fills the 128/256-row MXU M dimension and amortizes the ~0.35us per-grid-step
    overhead, while capping per-step f32 intermediates (y is (M, 3*NL)) so the
    epilogue stays out of spill territory.
    """
    nb = 1
    for cand in range(1, N + 1):
        if N % cand == 0 and cand * H <= max_rows:
            nb = cand
    return nb


def conv_block_pallas(x_nchw, params, *, nb=None):
    """Forward pass of conv_block. Input/output are NCHW (PyTorch convention).

    nb = images per grid step.  Default auto-picks the largest nb with nb*H <= 256:
    on single-TC v5e/v6e the grid is a sequential loop, so fewer, fatter steps win.
    On v7x pass nb explicitly (= N // (2k)) if the batch is large enough that both
    TensorCores can each still get >= ~128 rows per step.
    """
    w1, fs1, fb1, w2, fs2, fb2 = params
    N, C_IN, H, W = x_nchw.shape
    C_OUT = w1.shape[-1]
    NL = W * C_OUT

    if nb is None:
        nb = _pick_nb(N, H)
    assert N % nb == 0, "batch must be divisible by nb"

    # NCHW -> (N, H, W*C_IN): channels-last, (W, C) flattened onto lanes.
    # No jnp.pad here -- padding is folded into the banded weights / roll masks.
    x = jnp.transpose(x_nchw, (0, 2, 3, 1)).reshape(N, H, W * C_IN)

    # Fold BN scale (per output channel) into the conv weights, band them, and cast
    # to bf16 once per call; only the BN/bias shift stays as a kernel-side add.
    w1b = _band_weight(w1 * fs1.reshape(1, 1, 1, -1), W).astype(jnp.bfloat16)
    w2b = _band_weight(w2 * fs2.reshape(1, 1, 1, -1), W).astype(jnp.bfloat16)
    b1f = jnp.tile(fb1.reshape(1, C_OUT), (1, W))   # (1, NL), lane = w*C_OUT + c
    b2f = jnp.tile(fb2.reshape(1, C_OUT), (1, W))

    kernel = functools.partial(_conv_block_kernel, NB=nb, H=H, W=W,
                               C_IN=C_IN, C_OUT=C_OUT)

    out = pl.pallas_call(
        kernel,
        out_shape=jax.ShapeDtypeStruct((N, H, NL), jnp.float32),
        grid_spec=pltpu.PrefetchScalarGridSpec(
            num_scalar_prefetch=0,
            grid=(N // nb,),
            in_specs=[
                pl.BlockSpec((nb, H, W * C_IN), lambda n: (n, 0, 0)),
                # Grid-invariant weight/shift blocks (tiny at this scale; see TODO
                # in the header about Buffered(1) / vmem_limit_bytes at scale).
                pl.BlockSpec((W * C_IN, 3 * NL), lambda n: (0, 0)),
                pl.BlockSpec((1, NL), lambda n: (0, 0)),
                pl.BlockSpec((W * C_OUT, 3 * NL), lambda n: (0, 0)),
                pl.BlockSpec((1, NL), lambda n: (0, 0)),
            ],
            out_specs=pl.BlockSpec((nb, H, NL), lambda n: (n, 0, 0)),
        ),
        compiler_params=pltpu.CompilerParams(dimension_semantics=("parallel",)),
    )(x, w1b, b1f, w2b, b2f)

    # (N, H, W*C_OUT) -> NCHW to match PyTorch output convention.
    return jnp.transpose(out.reshape(N, H, W, C_OUT), (0, 3, 1, 2))


def init_params(key, in_ch, out_ch, eps=1e-5):
    """Deterministic parameter init. BN (eval-mode) + conv bias folded into
    per-channel scale/shift: y = conv(x) * s + b."""
    ks = jax.random.split(key, 10)

    def fold(bias, gamma, beta, rmean, rvar):
        s = gamma / jnp.sqrt(rvar + eps)
        b = (bias - rmean) * s + beta
        return s.reshape(1, -1).astype(jnp.float32), b.reshape(1, -1).astype(jnp.float32)

    # conv1 (HWIO) + BN1
    w1 = jax.random.normal(ks[0], (3, 3, in_ch, out_ch), jnp.float32) * 0.1
    b1 = jax.random.normal(ks[1], (out_ch,), jnp.float32) * 0.1
    g1 = 1.0 + jax.random.normal(ks[2], (out_ch,), jnp.float32) * 0.05
    be1 = jax.random.normal(ks[3], (out_ch,), jnp.float32) * 0.05
    rm1 = jax.random.normal(ks[4], (out_ch,), jnp.float32) * 0.05
    rv1 = 1.0 + jax.nn.softplus(jax.random.normal(ks[5], (out_ch,), jnp.float32)) * 0.1
    fs1, fb1 = fold(b1, g1, be1, rm1, rv1)

    # conv2 (HWIO) + BN2
    w2 = jax.random.normal(ks[6], (3, 3, out_ch, out_ch), jnp.float32) * 0.1
    b2 = jax.random.normal(ks[7], (out_ch,), jnp.float32) * 0.1
    g2 = 1.0 + jax.random.normal(ks[8], (out_ch,), jnp.float32) * 0.05
    be2 = jax.random.normal(ks[9], (out_ch,), jnp.float32) * 0.05
    rm2 = jnp.zeros((out_ch,), jnp.float32)
    rv2 = jnp.ones((out_ch,), jnp.float32)
    fs2, fb2 = fold(b2, g2, be2, rm2, rv2)

    return (w1, fs1, fb1, w2, fs2, fb2)


def conv_block_reference(x_nchw, params):
    """Pure-JAX (XLA, f32) reference used only to verify the kernel."""
    w1, fs1, fb1, w2, fs2, fb2 = params
    x = jnp.transpose(x_nchw, (0, 2, 3, 1))
    dn = ("NHWC", "HWIO", "NHWC")
    y = jax.lax.conv_general_dilated(x, w1, (1, 1), "SAME", dimension_numbers=dn)
    y = jnp.maximum(y * fs1.reshape(1, 1, 1, -1) + fb1.reshape(1, 1, 1, -1), 0.0)
    y = jax.lax.conv_general_dilated(y, w2, (1, 1), "SAME", dimension_numbers=dn)
    y = jnp.maximum(y * fs2.reshape(1, 1, 1, -1) + fb2.reshape(1, 1, 1, -1), 0.0)
    return jnp.transpose(y, (0, 3, 1, 2))


if __name__ == "__main__":
    key = jax.random.PRNGKey(0)
    k_x, k_p = jax.random.split(key)

    N, C_IN, C_OUT, H, W = 2, 4, 8, 16, 16
    x = jax.random.normal(k_x, (N, C_IN, H, W), jnp.float32)
    params = init_params(k_p, C_IN, C_OUT)

    # Auto nb -> nb=2 here (single fat grid step, nb>1 roll-masking path covered).
    out = conv_block_pallas(x, params)
    out = jax.block_until_ready(out)

    ref = jax.block_until_ready(conv_block_reference(x, params))
    # bf16 MXU inputs (f32 accumulation) vs f32 XLA reference: loosened tolerance.
    np.testing.assert_allclose(np.asarray(out), np.asarray(ref), rtol=1e-2, atol=1e-2)

    print("KERNEL_OK")
</pallas_src>

<mosaic_0001>
module attributes {stable_mosaic.version = 11 : i64} {
  func.func @_conv_block_kernel(%arg0: i32, %arg1: memref<2x16x64xf32, #tpu.memory_space<vmem>>, %arg2: memref<64x384xbf16, #tpu.memory_space<vmem>>, %arg3: memref<1x128xf32, #tpu.memory_space<vmem>>, %arg4: memref<128x384xbf16, #tpu.memory_space<vmem>>, %arg5: memref<1x128xf32, #tpu.memory_space<vmem>>, %arg6: memref<2x16x128xf32, #tpu.memory_space<vmem>>) attributes {dimension_semantics = [#tpu.dimension_semantics<parallel>], iteration_bounds = array<i64: 1>, scalar_prefetch = 0 : i64, scratch_operands = 0 : i64, tpu.core_type = #tpu.core_type<tc>, window_params = [{transform_indices = @transform_0, window_bounds = array<i64: 2, 16, 64>}, {pipeline_mode = #tpu.pipeline_mode<synchronous>, transform_indices = @transform_1, window_bounds = array<i64: 64, 384>}, {pipeline_mode = #tpu.pipeline_mode<synchronous>, transform_indices = @transform_2, window_bounds = array<i64: 1, 128>}, {pipeline_mode = #tpu.pipeline_mode<synchronous>, transform_indices = @transform_3, window_bounds = array<i64: 128, 384>}, {pipeline_mode = #tpu.pipeline_mode<synchronous>, transform_indices = @transform_4, window_bounds = array<i64: 1, 128>}, {transform_indices = @transform_5, window_bounds = array<i64: 2, 16, 128>}]} {
    %0 = tpu.iota {dimensions = array<i32: 0>} : vector<32x1xi32>
    %c16_i32 = arith.constant 16 : i32
    %c0_i32 = arith.constant 0 : i32
    %1 = arith.cmpi eq, %c16_i32, %c0_i32 : i32
    %c1_i32 = arith.constant 1 : i32
    %2 = arith.select %1, %c1_i32, %c16_i32 : i32
    %3 = vector.broadcast %2 : i32 to vector<32x1xi32>
    %4 = arith.remsi %0, %3 : vector<32x1xi32>
    %c0_i32_0 = arith.constant 0 : i32
    %5 = vector.broadcast %c0_i32_0 : i32 to vector<32x1xi32>
    %6 = arith.cmpi ne, %4, %5 : vector<32x1xi32>
    %c0_i32_1 = arith.constant 0 : i32
    %7 = vector.broadcast %c0_i32_1 : i32 to vector<32x1xi32>
    %8 = arith.cmpi slt, %4, %7 : vector<32x1xi32>
    %c0_i32_2 = arith.constant 0 : i32
    %9 = arith.cmpi slt, %2, %c0_i32_2 : i32
    %10 = vector.broadcast %9 : i1 to vector<32x1xi1>
    %11 = vector.broadcast %10 : vector<32x1xi1> to vector<32x1xi1>
    %12 = arith.xori %8, %11 : vector<32x1xi1>
    %13 = arith.andi %12, %6 : vector<32x1xi1>
    %14 = vector.broadcast %2 : i32 to vector<32x1xi32>
    %15 = arith.addi %4, %14 : vector<32x1xi32>
    %16 = arith.select %13, %15, %4 : vector<32x1xi1>, vector<32x1xi32>
    %c0_i32_3 = arith.constant 0 : i32
    %17 = vector.broadcast %c0_i32_3 : i32 to vector<32x1xi32>
    %18 = arith.cmpi ne, %16, %17 : vector<32x1xi32>
    %c15_i32 = arith.constant 15 : i32
    %19 = vector.broadcast %c15_i32 : i32 to vector<32x1xi32>
    %20 = arith.cmpi ne, %16, %19 : vector<32x1xi32>
    %c0 = arith.constant 0 : index
    %c0_4 = arith.constant 0 : index
    %c0_5 = arith.constant 0 : index
    %21 = vector.load %arg1[%c0, %c0_4, %c0_5] : memref<2x16x64xf32, #tpu.memory_space<vmem>>, vector<2x16x64xf32>
    %22 = vector.shape_cast %21 : vector<2x16x64xf32> to vector<32x64xf32>
    %23 = arith.truncf %22 : vector<32x64xf32> to vector<32x64xbf16>
    %c0_6 = arith.constant 0 : index
    %c0_7 = arith.constant 0 : index
    %24 = vector.load %arg2[%c0_6, %c0_7] : memref<64x384xbf16, #tpu.memory_space<vmem>>, vector<64x384xbf16>
    %cst = arith.constant dense<0.000000e+00> : vector<32x384xf32>
    %25 = tpu.matmul %23, %24, %cst {dimension_numbers = #tpu.dot_dimension_numbers<[1], [0], [0], [1], [0, 0, 1, 1], [], []>} : vector<32x64xbf16>, vector<64x384xbf16>, vector<32x384xf32> -> vector<32x384xf32>
    %26 = vector.extract_strided_slice %25 {offsets = [0, 0], sizes = [32, 128], strides = [1, 1]} : vector<32x384xf32> to vector<32x128xf32>
    %27 = vector.extract_strided_slice %25 {offsets = [0, 128], sizes = [32, 128], strides = [1, 1]} : vector<32x384xf32> to vector<32x128xf32>
    %28 = vector.extract_strided_slice %25 {offsets = [0, 256], sizes = [32, 128], strides = [1, 1]} : vector<32x384xf32> to vector<32x128xf32>
    %c1_i32_8 = arith.constant 1 : i32
    %29 = tpu.dynamic_rotate %26 by %c1_i32_8 dim 0 : vector<32x128xf32>, i32 -> vector<32x128xf32>
    %cst_9 = arith.constant 0.000000e+00 : f32
    %30 = vector.shape_cast %18 : vector<32x1xi1> to vector<32x1xi1>
    %31 = vector.broadcast %30 : vector<32x1xi1> to vector<32x128xi1>
    %32 = vector.broadcast %cst_9 : f32 to vector<32x128xf32>
    %33 = arith.select %31, %29, %32 : vector<32x128xi1>, vector<32x128xf32>
    %c31_i32 = arith.constant 31 : i32
    %34 = tpu.dynamic_rotate %28 by %c31_i32 dim 0 : vector<32x128xf32>, i32 -> vector<32x128xf32>
    %cst_10 = arith.constant 0.000000e+00 : f32
    %35 = vector.shape_cast %20 : vector<32x1xi1> to vector<32x1xi1>
    %36 = vector.broadcast %35 : vector<32x1xi1> to vector<32x128xi1>
    %37 = vector.broadcast %cst_10 : f32 to vector<32x128xf32>
    %38 = arith.select %36, %34, %37 : vector<32x128xi1>, vector<32x128xf32>
    %39 = arith.addf %27, %33 : vector<32x128xf32>
    %40 = arith.addf %39, %38 : vector<32x128xf32>
    %c0_11 = arith.constant 0 : index
    %c0_12 = arith.constant 0 : index
    %41 = vector.load %arg3[%c0_11, %c0_12] : memref<1x128xf32, #tpu.memory_space<vmem>>, vector<1x128xf32>
    %42 = vector.broadcast %41 : vector<1x128xf32> to vector<32x128xf32>
    %43 = arith.addf %40, %42 : vector<32x128xf32>
    %cst_13 = arith.constant 0.000000e+00 : f32
    %44 = vector.broadcast %cst_13 : f32 to vector<32x128xf32>
    %45 = arith.maximumf %43, %44 : vector<32x128xf32>
    %46 = arith.truncf %45 : vector<32x128xf32> to vector<32x128xbf16>
    %c0_14 = arith.constant 0 : index
    %c0_15 = arith.constant 0 : index
    %47 = vector.load %arg4[%c0_14, %c0_15] : memref<128x384xbf16, #tpu.memory_space<vmem>>, vector<128x384xbf16>
    %cst_16 = arith.constant dense<0.000000e+00> : vector<32x384xf32>
    %48 = tpu.matmul %46, %47, %cst_16 {dimension_numbers = #tpu.dot_dimension_numbers<[1], [0], [0], [1], [0, 0, 1, 1], [], []>} : vector<32x128xbf16>, vector<128x384xbf16>, vector<32x384xf32> -> vector<32x384xf32>
    %49 = vector.extract_strided_slice %48 {offsets = [0, 0], sizes = [32, 128], strides = [1, 1]} : vector<32x384xf32> to vector<32x128xf32>
    %50 = vector.extract_strided_slice %48 {offsets = [0, 128], sizes = [32, 128], strides = [1, 1]} : vector<32x384xf32> to vector<32x128xf32>
    %51 = vector.extract_strided_slice %48 {offsets = [0, 256], sizes = [32, 128], strides = [1, 1]} : vector<32x384xf32> to vector<32x128xf32>
    %c1_i32_17 = arith.constant 1 : i32
    %52 = tpu.dynamic_rotate %49 by %c1_i32_17 dim 0 : vector<32x128xf32>, i32 -> vector<32x128xf32>
    %cst_18 = arith.constant 0.000000e+00 : f32
    %53 = vector.shape_cast %18 : vector<32x1xi1> to vector<32x1xi1>
    %54 = vector.broadcast %53 : vector<32x1xi1> to vector<32x128xi1>
    %55 = vector.broadcast %cst_18 : f32 to vector<32x128xf32>
    %56 = arith.select %54, %52, %55 : vector<32x128xi1>, vector<32x128xf32>
    %c31_i32_19 = arith.constant 31 : i32
    %57 = tpu.dynamic_rotate %51 by %c31_i32_19 dim 0 : vector<32x128xf32>, i32 -> vector<32x128xf32>
    %cst_20 = arith.constant 0.000000e+00 : f32
    %58 = vector.shape_cast %20 : vector<32x1xi1> to vector<32x1xi1>
    %59 = vector.broadcast %58 : vector<32x1xi1> to vector<32x128xi1>
    %60 = vector.broadcast %cst_20 : f32 to vector<32x128xf32>
    %61 = arith.select %59, %57, %60 : vector<32x128xi1>, vector<32x128xf32>
    %62 = arith.addf %50, %56 : vector<32x128xf32>
    %63 = arith.addf %62, %61 : vector<32x128xf32>
    %c0_21 = arith.constant 0 : index
    %c0_22 = arith.constant 0 : index
    %64 = vector.load %arg5[%c0_21, %c0_22] : memref<1x128xf32, #tpu.memory_space<vmem>>, vector<1x128xf32>
    %65 = vector.broadcast %64 : vector<1x128xf32> to vector<32x128xf32>
    %66 = arith.addf %63, %65 : vector<32x128xf32>
    %cst_23 = arith.constant 0.000000e+00 : f32
    %67 = vector.broadcast %cst_23 : f32 to vector<32x128xf32>
    %68 = arith.maximumf %66, %67 : vector<32x128xf32>
    %69 = vector.shape_cast %68 : vector<32x128xf32> to vector<2x16x128xf32>
    %c0_24 = arith.constant 0 : index
    %c0_25 = arith.constant 0 : index
    %c0_26 = arith.constant 0 : index
    %70 = vector.load %arg6[%c0_24, %c0_25, %c0_26] : memref<2x16x128xf32, #tpu.memory_space<vmem>>, vector<2x16x128xf32>
    tpu.vector_store %arg6[%c0_24, %c0_25, %c0_26], %69 {strides = array<i32>} : memref<2x16x128xf32, #tpu.memory_space<vmem>>, vector<2x16x128xf32>,
    return
  }
  func.func @transform_0(%arg0: i32) -> (i32, i32, i32) {
    %c0_i32 = arith.constant 0 : i32
    %c0_i32_0 = arith.constant 0 : i32
    %c0_i32_1 = arith.constant 0 : i32
    return %arg0, %c0_i32, %c0_i32_0 : i32, i32, i32
  }
  func.func @transform_1(%arg0: i32) -> (i32, i32) {
    %c0_i32 = arith.constant 0 : i32
    %c0_i32_0 = arith.constant 0 : i32
    %c0_i32_1 = arith.constant 0 : i32
    return %c0_i32, %c0_i32_0 : i32, i32
  }
  func.func @transform_2(%arg0: i32) -> (i32, i32) {
    %c0_i32 = arith.constant 0 : i32
    %c0_i32_0 = arith.constant 0 : i32
    %c0_i32_1 = arith.constant 0 : i32
    return %c0_i32, %c0_i32_0 : i32, i32
  }
  func.func @transform_3(%arg0: i32) -> (i32, i32) {
    %c0_i32 = arith.constant 0 : i32
    %c0_i32_0 = arith.constant 0 : i32
    %c0_i32_1 = arith.constant 0 : i32
    return %c0_i32, %c0_i32_0 : i32, i32
  }
  func.func @transform_4(%arg0: i32) -> (i32, i32) {
    %c0_i32 = arith.constant 0 : i32
    %c0_i32_0 = arith.constant 0 : i32
    %c0_i32_1 = arith.constant 0 : i32
    return %c0_i32, %c0_i32_0 : i32, i32
  }
  func.func @transform_5(%arg0: i32) -> (i32, i32, i32) {
    %c0_i32 = arith.constant 0 : i32
    %c0_i32_0 = arith.constant 0 : i32
    %c0_i32_1 = arith.constant 0 : i32
    return %arg0, %c0_i32, %c0_i32_0 : i32, i32, i32
  }
}

</mosaic_0001>

<llo_original>
// kernel: tpu_custom_call.1
$region0: #{tpu_custom_call.1}
  #allocation0 [shape = 'u32[]', space=smem, size = 0x4, offset = 0x4, fixed_abs, tag = 'smem constant byte address 0x4 - core index']
  #allocation1 [shape = 'u32[72,128]{1,0:T(1,128)}', space=vmem, size = 0x9000, scoped, tag = 'internal scratch']
  %s0 = inlined_call_operand.hbm [shape: f32[2,16,64], index: 0, kind: input, shape index: {}]
  %s1 = inlined_call_operand.hbm [shape: bf16[64,384], index: 1, kind: input, shape index: {}]
  %s2 = inlined_call_operand.vmem [shape: f32[1,128], index: 2, kind: input, shape index: {}]
  %s3 = inlined_call_operand.hbm [shape: bf16[128,384], index: 3, kind: input, shape index: {}]
  %s4 = inlined_call_operand.vmem [shape: f32[1,128], index: 4, kind: input, shape index: {}]
  %s5 = inlined_call_operand.hbm [shape: f32[2,16,128], index: 5, kind: output, shape index: {}]
  %s6 = sld [smem:[#allocation0]]
  $region42: #{tpu_custom_call.1} parent=0
    _
  %s8 = ssub.s32 1, %s6
  %s9 = scalar_select 0, %s8, %s6
  $region1: #{tpu_custom_call.1} parent=0
    #allocation2 [shape = 'u8[16384]{0}', space=vmem, size = 0x4000, scoped, tag = 'input window, operand 0, single buffered']
    #allocation3 [shape = 's32[1]{0}', space=sflag, size = 0x4, scoped, tag = 'scoped memory for tpu_custom_call.1']
    #allocation4 [shape = 's32[1]{0}', space=sflag, size = 0x4, scoped, tag = 'scoped memory for tpu_custom_call.1']
    #allocation5 [shape = 'u8[49152]{0}', space=vmem, size = 0xc000, scoped, tag = 'input window, operand 1, single buffered']
    #allocation6 [shape = 's32[1]{0}', space=sflag, size = 0x4, scoped, tag = 'scoped memory for tpu_custom_call.1']
    #allocation7 [shape = 'u8[98304]{0}', space=vmem, size = 0x18000, scoped, tag = 'input window, operand 3, single buffered']
    #allocation8 [shape = 'u8[16384]{0}', space=vmem, size = 0x4000, scoped, tag = 'output window, operand 0, single buffered']
    %10 = vsyncpa [#allocation3], 0
    %11 = vsyncpa [#allocation6], 0
    %12 = vsyncpa [#allocation4], 0
    // Predicated region
    $region2: #{tpu_custom_call.1} parent=1 // pred_check
      _
    $region3: #{tpu_custom_call.1} parent=1 // pred_check_branch
      %14 = sbr.rel (0) target = $region5
    $region4: #{tpu_custom_call.1} parent=1 // pred_region
      %16 = vsyncadd [#allocation3], 0
      %s17 = sshll.u32 %s0, 4
      %s18 = int_to_ptr.hbm [resolvable:$true] %s17
      %s19 = sshll.u32 [#allocation2], 4
      %s20 = int_to_ptr.vmem [resolvable:$true] %s19
      %25 = dma.hbm_to_vmem [thread:$0]  %s18, 512, %s20, [#allocation3], 128, 128, 8
    $region5: #{tpu_custom_call.1} parent=1 // pred_fallthru
      _
    // Predicated region
    $region6: #{tpu_custom_call.1} parent=1 // pred_check
      _
    $region7: #{tpu_custom_call.1} parent=1 // pred_check_branch
      %27 = sbr.rel (0) target = $region9
    $region8: #{tpu_custom_call.1} parent=1 // pred_region
      %29 = vsyncadd [#allocation6], 0
      %s30 = sshll.u32 %s1, 4
      %s31 = int_to_ptr.hbm [resolvable:$true] %s30
      %s32 = sshll.u32 [#allocation5], 4
      %s33 = int_to_ptr.vmem [resolvable:$true] %s32
      %38 = dma.hbm_to_vmem [thread:$0]  %s31, 1536, %s33, [#allocation6], 192, 192, 12
    $region9: #{tpu_custom_call.1} parent=1 // pred_fallthru
      _
    // Predicated region
    $region10: #{tpu_custom_call.1} parent=1 // pred_check
      _
    $region11: #{tpu_custom_call.1} parent=1 // pred_check_branch
      %40 = sbr.rel (0) target = $region13
    $region12: #{tpu_custom_call.1} parent=1 // pred_region
      _
    $region13: #{tpu_custom_call.1} parent=1 // pred_fallthru
      _
    // Predicated region
    $region14: #{tpu_custom_call.1} parent=1 // pred_check
      _
    $region15: #{tpu_custom_call.1} parent=1 // pred_check_branch
      %42 = sbr.rel (0) target = $region17
    $region16: #{tpu_custom_call.1} parent=1 // pred_region
      %44 = vsyncadd [#allocation6], 0
      %s45 = sshll.u32 %s3, 4
      %s46 = int_to_ptr.hbm [resolvable:$true] %s45
      %s47 = sshll.u32 [#allocation7], 4
      %s48 = int_to_ptr.vmem [resolvable:$true] %s47
      %53 = dma.hbm_to_vmem [thread:$0]  %s46, 3072, %s48, [#allocation6], 192, 192, 12
    $region17: #{tpu_custom_call.1} parent=1 // pred_fallthru
      _
    // Predicated region
    $region18: #{tpu_custom_call.1} parent=1 // pred_check
      _
    $region19: #{tpu_custom_call.1} parent=1 // pred_check_branch
      %55 = sbr.rel (0) target = $region21
    $region20: #{tpu_custom_call.1} parent=1 // pred_region
      _
    $region21: #{tpu_custom_call.1} parent=1 // pred_fallthru
      _
    // Predicated region
    $region22: #{tpu_custom_call.1} parent=1 // pred_check
      _
    $region23: #{tpu_custom_call.1} parent=1 // pred_check_branch
      %57 = sbr.rel (0) target = $region25
    $region24: #{tpu_custom_call.1} parent=1 // pred_region
      %59 = dma.done [#allocation3], 512
    $region25: #{tpu_custom_call.1} parent=1 // pred_fallthru
      _
    // Predicated region
    $region26: #{tpu_custom_call.1} parent=1 // pred_check
      _
    $region27: #{tpu_custom_call.1} parent=1 // pred_check_branch
      %61 = sbr.rel (0) target = $region29
    $region28: #{tpu_custom_call.1} parent=1 // pred_region
      %63 = dma.done [#allocation6], 1536
    $region29: #{tpu_custom_call.1} parent=1 // pred_fallthru
      _
    // Predicated region
    $region30: #{tpu_custom_call.1} parent=1 // pred_check
      _
    $region31: #{tpu_custom_call.1} parent=1 // pred_check_branch
      %65 = sbr.rel (0) target = $region33
    $region32: #{tpu_custom_call.1} parent=1 // pred_region
      %67 = dma.done [#allocation6], 3072
    $region33: #{tpu_custom_call.1} parent=1 // pred_fallthru
      _
    %v69 = vlaneseq
    %v70 = vshrl.u32 %v69, 7
    %v71 = vadd.s32 %v70, 8
    %v72 = vadd.s32 %v70, 16
    %v73 = vadd.s32 %v70, 24
    %vm74 = vcmp.lt.s32.totalorder %v70, 0
    %v75 = vsub.s32 0, %v70
    %v76 = vsel %vm74, %v75, %v70
    %v77 = vshrl.u32 %v76, 4
    %v78 = vand.u32 %v76, 15
    %v79 = vsub.s32 0, %v78
    %v80 = vsel %vm74, %v79, %v78
    %vm81 = vcmp.lt.s32.totalorder %v71, 0
    %v82 = vsub.s32 0, %v71
    %v83 = vsel %vm81, %v82, %v71
    %v84 = vshrl.u32 %v83, 4
    %v85 = vand.u32 %v83, 15
    %v86 = vsub.s32 0, %v85
    %v87 = vsel %vm81, %v86, %v85
    %vm88 = vcmp.lt.s32.totalorder %v72, 0
    %v89 = vsub.s32 0, %v72
    %v90 = vsel %vm88, %v89, %v72
    %v91 = vshrl.u32 %v90, 4
    %v92 = vand.u32 %v90, 15
    %v93 = vsub.s32 0, %v92
    %v94 = vsel %vm88, %v93, %v92
    %vm95 = vcmp.lt.s32.totalorder %v73, 0
    %v96 = vsub.s32 0, %v73
    %v97 = vsel %vm95, %v96, %v73
    %v98 = vshrl.u32 %v97, 4
    %v99 = vand.u32 %v97, 15
    %v100 = vsub.s32 0, %v99
    %v101 = vsel %vm95, %v100, %v99
    %vm102 = vcmp.ne.s32.totalorder %v80, 0
    %vm103 = vcmp.ne.s32.totalorder %v87, 0
    %vm104 = vcmp.ne.s32.totalorder %v94, 0
    %vm105 = vcmp.ne.s32.totalorder %v101, 0
    %vm106 = vcmp.lt.s32.totalorder %v80, 0
    %vm107 = vcmp.lt.s32.totalorder %v87, 0
    %vm108 = vcmp.lt.s32.totalorder %v94, 0
    %vm109 = vcmp.lt.s32.totalorder %v101, 0
    %vm110 = vmand %vm106, %vm102
    %vm111 = vmand %vm107, %vm103
    %vm112 = vmand %vm108, %vm104
    %vm113 = vmand %vm109, %vm105
    %v114 = vadd.s32 %v80, 16
    %v115 = vadd.s32 %v87, 16
    %v116 = vadd.s32 %v94, 16
    %v117 = vadd.s32 %v101, 16
    %v118 = vsel %vm110, %v114, %v80
    %v119 = vsel %vm111, %v115, %v87
    %v120 = vsel %vm112, %v116, %v94
    %v121 = vsel %vm113, %v117, %v101
    %vm122 = vcmp.ne.s32.totalorder %v118, 0
    %vm123 = vcmp.ne.s32.totalorder %v119, 0
    %vm124 = vcmp.ne.s32.totalorder %v120, 0
    %vm125 = vcmp.ne.s32.totalorder %v121, 0
    %vm126 = vcmp.ne.s32.totalorder %v118, 15
    %vm127 = vcmp.ne.s32.totalorder %v119, 15
    %vm128 = vcmp.ne.s32.totalorder %v120, 15
    %vm129 = vcmp.ne.s32.totalorder %v121, 15
    %v130 = vld [vmem:[#allocation2] sm:$0xff]
    %v131 = vld [vmem:[#allocation2 + $0x8] sm:$0xff]
    %v132 = vld [vmem:[#allocation2 + $0x10] sm:$0xff]
    %v133 = vld [vmem:[#allocation2 + $0x18] sm:$0xff]
    %v134 = vpack.c.bf16 %v131, %v130
    %v135 = vpack.c.bf16 %v133, %v132
    %v136 = vld [vmem:[#allocation5] sm:$0xff]
    %v137 = vld [vmem:[#allocation5 + $0x8] sm:$0xf]
    %v138 = vld [vmem:[#allocation5 + $0xc] sm:$0xff]
    %v139 = vld [vmem:[#allocation5 + $0x14] sm:$0xf]
    %v140 = vld [vmem:[#allocation5 + $0x18] sm:$0xff]
    %v141 = vld [vmem:[#allocation5 + $0x20] sm:$0xf]
    %v142 = vld [vmem:[#allocation5 + $0x24] sm:$0xff]
    %v143 = vld [vmem:[#allocation5 + $0x2c] sm:$0xf]
    %v144 = vld [vmem:[#allocation5 + $0x30] sm:$0xff]
    %v145 = vld [vmem:[#allocation5 + $0x38] sm:$0xf]
    %v146 = vld [vmem:[#allocation5 + $0x3c] sm:$0xff]
    %v147 = vld [vmem:[#allocation5 + $0x44] sm:$0xf]
    %v148 = vld [vmem:[#allocation5 + $0x48] sm:$0xff]
    %v149 = vld [vmem:[#allocation5 + $0x50] sm:$0xf]
    %v150 = vld [vmem:[#allocation5 + $0x54] sm:$0xff]
    %v151 = vld [vmem:[#allocation5 + $0x5c] sm:$0xf]
    %v168 = vunpack.c.l.b16 %v136
    %v169 = vunpack.c.h.b16 %v136
    %v170 = vunpack.c.l.b16 %v137
    %v171 = vunpack.c.l.b16 %v138
    %v172 = vunpack.c.h.b16 %v138
    %v173 = vunpack.c.l.b16 %v139
    %v174 = vunpack.c.l.b16 %v140
    %v175 = vunpack.c.h.b16 %v140
    %v176 = vunpack.c.l.b16 %v141
    %v177 = vunpack.c.l.b16 %v142
    %v178 = vunpack.c.h.b16 %v142
    %v179 = vunpack.c.l.b16 %v143
    %v180 = vunpack.c.l.b16 %v144
    %v181 = vunpack.c.h.b16 %v144
    %v182 = vunpack.c.l.b16 %v145
    %v183 = vunpack.c.l.b16 %v146
    %v184 = vunpack.c.h.b16 %v146
    %v185 = vunpack.c.l.b16 %v147
    %v186 = vunpack.c.l.b16 %v148
    %v187 = vunpack.c.h.b16 %v148
    %v188 = vunpack.c.l.b16 %v149
    %v189 = vunpack.c.l.b16 %v150
    %v190 = vunpack.c.h.b16 %v150
    %v191 = vunpack.c.l.b16 %v151
    %v192 = vpack.c.b16 %v171, %v168
    %v193 = vpack.c.b16 %v172, %v169
    %v194 = vpack.c.b16 %v173, %v170
    %v195 = vpack.c.b16 %v177, %v174
    %v196 = vpack.c.b16 %v178, %v175
    %v197 = vpack.c.b16 %v179, %v176
    %v198 = vpack.c.b16 %v183, %v180
    %v199 = vpack.c.b16 %v184, %v181
    %v200 = vpack.c.b16 %v185, %v182
    %v201 = vpack.c.b16 %v189, %v186
    %v202 = vpack.c.b16 %v190, %v187
    %v203 = vpack.c.b16 %v191, %v188
    %vm216 = vcmask 523264
    %v218 = vsel %vm216, %v134, 0
    %v221 = vsel %vm216, %v135, 0
    %223 = vmatpush.bf16.msra.mxu0 0
    %224 = vmatpush.bf16.msra.mxu0 0
    %225 = vmatpush.bf16.msra.mxu0 0
    %226 = vmatpush.bf16.msra.mxu0 0
    %227 = vmatpush.bf16.msra.mxu0 %v201
    %228 = vmatpush.bf16.msra.mxu0 %v198
    %229 = vmatpush.bf16.msra.mxu0 %v195
    %230 = vmatpush.bf16.msra.mxu0 %v192
    %231 = vmatmul.bf16.gmra.mxu0 %v218
    %v232 = vpop.f32.mrf.mxu0
    %v233 = vadd.f32 0.0, %v232
    %v234 = vpop.f32.mrf.mxu0
    %v235 = vadd.f32 0.0, %v234
    %236 = vmatmul.bf16.gmra.mxu0 %v221
    %v237 = vpop.f32.mrf.mxu0
    %v238 = vadd.f32 0.0, %v237
    %v239 = vpop.f32.mrf.mxu0
    %v240 = vadd.f32 0.0, %v239
    %241 = vdwg.mxu0
    %242 = vmatpush.bf16.msra.mxu0 0
    %243 = vmatpush.bf16.msra.mxu0 0
    %244 = vmatpush.bf16.msra.mxu0 0
    %245 = vmatpush.bf16.msra.mxu0 0
    %246 = vmatpush.bf16.msra.mxu0 %v202
    %247 = vmatpush.bf16.msra.mxu0 %v199
    %248 = vmatpush.bf16.msra.mxu0 %v196
    %249 = vmatpush.bf16.msra.mxu0 %v193
    %250 = vmatmul.bf16.gmra.mxu0 %v218
    %v251 = vpop.f32.mrf.mxu0
    %v252 = vadd.f32 0.0, %v251
    %v253 = vpop.f32.mrf.mxu0
    %v254 = vadd.f32 0.0, %v253
    %255 = vmatmul.bf16.gmra.mxu0 %v221
    %v256 = vpop.f32.mrf.mxu0
    %v257 = vadd.f32 0.0, %v256
    %v258 = vpop.f32.mrf.mxu0
    %v259 = vadd.f32 0.0, %v258
    %260 = vdwg.mxu0
    %261 = vmatpush.bf16.msra.mxu0 0
    %262 = vmatpush.bf16.msra.mxu0 0
    %263 = vmatpush.bf16.msra.mxu0 0
    %264 = vmatpush.bf16.msra.mxu0 0
    %265 = vmatpush.bf16.msra.mxu0 %v203
    %266 = vmatpush.bf16.msra.mxu0 %v200
    %267 = vmatpush.bf16.msra.mxu0 %v197
    %268 = vmatpush.bf16.msra.mxu0 %v194
    %269 = vmatmul.bf16.gmra.mxu0 %v218
    %v270 = vpop.f32.mrf.mxu0
    %v271 = vadd.f32 0.0, %v270
    %v272 = vpop.f32.mrf.mxu0
    %v273 = vadd.f32 0.0, %v272
    %274 = vmatmul.bf16.gmra.mxu0 %v221
    %v275 = vpop.f32.mrf.mxu0
    %v276 = vadd.f32 0.0, %v275
    %v277 = vpop.f32.mrf.mxu0
    %v278 = vadd.f32 0.0, %v277
    %279 = vdwg.mxu0
    %v280 = vrot.slane %v233, 7
    %v281 = vrot.slane %v235, 7
    %v282 = vrot.slane %v238, 7
    %v283 = vrot.slane %v240, 7
    %vm284 = vcmp.lt.s32.totalorder %v70, 1
    %v285 = vsel %vm284, %v282, %v283
    %v286 = vsel %vm284, %v281, %v282
    %v287 = vsel %vm284, %v280, %v281
    %v288 = vsel %vm284, %v283, %v280
    %v289 = vsel %vm122, 1, 0
    %v290 = vsel %vm123, 1, 0
    %v291 = vsel %vm124, 1, 0
    %v292 = vsel %vm125, 1, 0
    %vm293 = vcmp.eq.s32.totalorder %v289, 1
    %vm294 = vcmp.eq.s32.totalorder %v290, 1
    %vm295 = vcmp.eq.s32.totalorder %v291, 1
    %vm296 = vcmp.eq.s32.totalorder %v292, 1
    %v297 = vsel %vm293, %v288, 0.0
    %v298 = vsel %vm294, %v287, 0.0
    %v299 = vsel %vm295, %v286, 0.0
    %v300 = vsel %vm296, %v285, 0.0
    %v301 = vrot.slane %v271, 1
    %v302 = vrot.slane %v273, 1
    %v303 = vrot.slane %v276, 1
    %v304 = vrot.slane %v278, 1
    %vm305 = vcmp.lt.s32.totalorder %v70, 7
    %v306 = vsel %vm305, %v303, %v304
    %v307 = vsel %vm305, %v302, %v303
    %v308 = vsel %vm305, %v301, %v302
    %v309 = vsel %vm305, %v304, %v301
    %v310 = vsel %vm126, 1, 0
    %v311 = vsel %vm127, 1, 0
    %v312 = vsel %vm128, 1, 0
    %v313 = vsel %vm129, 1, 0
    %vm314 = vcmp.eq.s32.totalorder %v310, 1
    %vm315 = vcmp.eq.s32.totalorder %v311, 1
    %vm316 = vcmp.eq.s32.totalorder %v312, 1
    %vm317 = vcmp.eq.s32.totalorder %v313, 1
    %v318 = vsel %vm314, %v308, 0.0
    %v319 = vsel %vm315, %v307, 0.0
    %v320 = vsel %vm316, %v306, 0.0
    %v321 = vsel %vm317, %v309, 0.0
    %v322 = vadd.f32 %v252, %v297
    %v323 = vadd.f32 %v254, %v298
    %v324 = vadd.f32 %v257, %v299
    %v325 = vadd.f32 %v259, %v300
    %v326 = vadd.f32 %v322, %v318
    %v327 = vadd.f32 %v323, %v319
    %v328 = vadd.f32 %v324, %v320
    %v329 = vadd.f32 %v325, %v321
    %v330 = vld [vmem:[%s2] sm:$0x1]
    %v332 = vperm.slane %v330, 0
    %v334 = vadd.f32 %v326, %v332
    %v335 = vadd.f32 %v327, %v332
    %v336 = vadd.f32 %v328, %v332
    %v337 = vadd.f32 %v329, %v332
    %v338 = vmax.f32 %v334, 0.0
    %v339 = vmax.f32 %v335, 0.0
    %v340 = vmax.f32 %v336, 0.0
    %v341 = vmax.f32 %v337, 0.0
    %v342 = vpack.c.bf16 %v339, %v338
    %v343 = vpack.c.bf16 %v341, %v340
    %v344 = vld [vmem:[#allocation7] sm:$0xff]
    %v345 = vld [vmem:[#allocation7 + $0x8] sm:$0xf]
    %v346 = vld [vmem:[#allocation7 + $0xc] sm:$0xff]
    %v347 = vld [vmem:[#allocation7 + $0x14] sm:$0xf]
    %v348 = vld [vmem:[#allocation7 + $0x18] sm:$0xff]
    %v349 = vld [vmem:[#allocation7 + $0x20] sm:$0xf]
    %v350 = vld [vmem:[#allocation7 + $0x24] sm:$0xff]
    %v351 = vld [vmem:[#allocation7 + $0x2c] sm:$0xf]
    %v352 = vld [vmem:[#allocation7 + $0x30] sm:$0xff]
    %v353 = vld [vmem:[#allocation7 + $0x38] sm:$0xf]
    %v354 = vld [vmem:[#allocation7 + $0x3c] sm:$0xff]
    %v355 = vld [vmem:[#allocation7 + $0x44] sm:$0xf]
    %v356 = vld [vmem:[#allocation7 + $0x48] sm:$0xff]
    %v357 = vld [vmem:[#allocation7 + $0x50] sm:$0xf]
    %v358 = vld [vmem:[#allocation7 + $0x54] sm:$0xff]
    %v359 = vld [vmem:[#allocation7 + $0x5c] sm:$0xf]
    %v360 = vld [vmem:[#allocation7 + $0x60] sm:$0xff]
    %v361 = vld [vmem:[#allocation7 + $0x68] sm:$0xf]
    %v362 = vld [vmem:[#allocation7 + $0x6c] sm:$0xff]
    %v363 = vld [vmem:[#allocation7 + $0x74] sm:$0xf]
    %v364 = vld [vmem:[#allocation7 + $0x78] sm:$0xff]
    %v365 = vld [vmem:[#allocation7 + $0x80] sm:$0xf]
    %v366 = vld [vmem:[#allocation7 + $0x84] sm:$0xff]
    %v367 = vld [vmem:[#allocation7 + $0x8c] sm:$0xf]
    %v368 = vld [vmem:[#allocation7 + $0x90] sm:$0xff]
    %v369 = vld [vmem:[#allocation7 + $0x98] sm:$0xf]
    %v370 = vld [vmem:[#allocation7 + $0x9c] sm:$0xff]
    %v371 = vld [vmem:[#allocation7 + $0xa4] sm:$0xf]
    %v372 = vld [vmem:[#allocation7 + $0xa8] sm:$0xff]
    %v373 = vld [vmem:[#allocation7 + $0xb0] sm:$0xf]
    %v374 = vld [vmem:[#allocation7 + $0xb4] sm:$0xff]
    %v375 = vld [vmem:[#allocation7 + $0xbc] sm:$0xf]
    %v408 = vunpack.c.l.b16 %v344
    %v409 = vunpack.c.h.b16 %v344
    %v410 = vunpack.c.l.b16 %v345
    %v411 = vunpack.c.l.b16 %v346
    %v412 = vunpack.c.h.b16 %v346
    %v413 = vunpack.c.l.b16 %v347
    %v414 = vunpack.c.l.b16 %v348
    %v415 = vunpack.c.h.b16 %v348
    %v416 = vunpack.c.l.b16 %v349
    %v417 = vunpack.c.l.b16 %v350
    %v418 = vunpack.c.h.b16 %v350
    %v419 = vunpack.c.l.b16 %v351
    %v420 = vunpack.c.l.b16 %v352
    %v421 = vunpack.c.h.b16 %v352
    %v422 = vunpack.c.l.b16 %v353
    %v423 = vunpack.c.l.b16 %v354
    %v424 = vunpack.c.h.b16 %v354
    %v425 = vunpack.c.l.b16 %v355
    %v426 = vunpack.c.l.b16 %v356
    %v427 = vunpack.c.h.b16 %v356
    %v428 = vunpack.c.l.b16 %v357
    %v429 = vunpack.c.l.b16 %v358
    %v430 = vunpack.c.h.b16 %v358
    %v431 = vunpack.c.l.b16 %v359
    %v432 = vunpack.c.l.b16 %v360
    %v433 = vunpack.c.h.b16 %v360
    %v434 = vunpack.c.l.b16 %v361
    %v435 = vunpack.c.l.b16 %v362
    %v436 = vunpack.c.h.b16 %v362
    %v437 = vunpack.c.l.b16 %v363
    %v438 = vunpack.c.l.b16 %v364
    %v439 = vunpack.c.h.b16 %v364
    %v440 = vunpack.c.l.b16 %v365
    %v441 = vunpack.c.l.b16 %v366
    %v442 = vunpack.c.h.b16 %v366
    %v443 = vunpack.c.l.b16 %v367
    %v444 = vunpack.c.l.b16 %v368
    %v445 = vunpack.c.h.b16 %v368
    %v446 = vunpack.c.l.b16 %v369
    %v447 = vunpack.c.l.b16 %v370
    %v448 = vunpack.c.h.b16 %v370
    %v449 = vunpack.c.l.b16 %v371
    %v450 = vunpack.c.l.b16 %v372
    %v451 = vunpack.c.h.b16 %v372
    %v452 = vunpack.c.l.b16 %v373
    %v453 = vunpack.c.l.b16 %v374
    %v454 = vunpack.c.h.b16 %v374
    %v455 = vunpack.c.l.b16 %v375
    %v456 = vpack.c.b16 %v411, %v408
    %v457 = vpack.c.b16 %v412, %v409
    %v458 = vpack.c.b16 %v413, %v410
    %v459 = vpack.c.b16 %v417, %v414
    %v460 = vpack.c.b16 %v418, %v415
    %v461 = vpack.c.b16 %v419, %v416
    %v462 = vpack.c.b16 %v423, %v420
    %v463 = vpack.c.b16 %v424, %v421
    %v464 = vpack.c.b16 %v425, %v422
    %v465 = vpack.c.b16 %v429, %v426
    %v466 = vpack.c.b16 %v430, %v427
    %v467 = vpack.c.b16 %v431, %v428
    %v468 = vpack.c.b16 %v435, %v432
    %v469 = vpack.c.b16 %v436, %v433
    %v470 = vpack.c.b16 %v437, %v434
    %v471 = vpack.c.b16 %v441, %v438
    %v472 = vpack.c.b16 %v442, %v439
    %v473 = vpack.c.b16 %v443, %v440
    %v474 = vpack.c.b16 %v447, %v444
    %v475 = vpack.c.b16 %v448, %v445
    %v476 = vpack.c.b16 %v449, %v446
    %v477 = vpack.c.b16 %v453, %v450
    %v478 = vpack.c.b16 %v454, %v451
    %v479 = vpack.c.b16 %v455, %v452
    %504 = vmatpush.bf16.msra.mxu0 %v477
    %505 = vmatpush.bf16.msra.mxu0 %v474
    %506 = vmatpush.bf16.msra.mxu0 %v471
    %507 = vmatpush.bf16.msra.mxu0 %v468
    %508 = vmatpush.bf16.msra.mxu0 %v465
    %509 = vmatpush.bf16.msra.mxu0 %v462
    %510 = vmatpush.bf16.msra.mxu0 %v459
    %511 = vmatpush.bf16.msra.mxu0 %v456
    %512 = vmatmul.bf16.gmra.mxu0 %v342
    %v513 = vpop.f32.mrf.mxu0
    %v514 = vadd.f32 0.0, %v513
    %v515 = vpop.f32.mrf.mxu0
    %v516 = vadd.f32 0.0, %v515
    %517 = vmatmul.bf16.gmra.mxu0 %v343
    %v518 = vpop.f32.mrf.mxu0
    %v519 = vadd.f32 0.0, %v518
    %v520 = vpop.f32.mrf.mxu0
    %v521 = vadd.f32 0.0, %v520
    %522 = vdwg.mxu0
    %523 = vmatpush.bf16.msra.mxu0 %v478
    %524 = vmatpush.bf16.msra.mxu0 %v475
    %525 = vmatpush.bf16.msra.mxu0 %v472
    %526 = vmatpush.bf16.msra.mxu0 %v469
    %527 = vmatpush.bf16.msra.mxu0 %v466
    %528 = vmatpush.bf16.msra.mxu0 %v463
    %529 = vmatpush.bf16.msra.mxu0 %v460
    %530 = vmatpush.bf16.msra.mxu0 %v457
    %531 = vmatmul.bf16.gmra.mxu0 %v342
    %v532 = vpop.f32.mrf.mxu0
    %v533 = vadd.f32 0.0, %v532
    %v534 = vpop.f32.mrf.mxu0
    %v535 = vadd.f32 0.0, %v534
    %536 = vmatmul.bf16.gmra.mxu0 %v343
    %v537 = vpop.f32.mrf.mxu0
    %v538 = vadd.f32 0.0, %v537
    %v539 = vpop.f32.mrf.mxu0
    %v540 = vadd.f32 0.0, %v539
    %541 = vdwg.mxu0
    %542 = vmatpush.bf16.msra.mxu0 %v479
    %543 = vmatpush.bf16.msra.mxu0 %v476
    %544 = vmatpush.bf16.msra.mxu0 %v473
    %545 = vmatpush.bf16.msra.mxu0 %v470
    %546 = vmatpush.bf16.msra.mxu0 %v467
    %547 = vmatpush.bf16.msra.mxu0 %v464
    %548 = vmatpush.bf16.msra.mxu0 %v461
    %549 = vmatpush.bf16.msra.mxu0 %v458
    %550 = vmatmul.bf16.gmra.mxu0 %v342
    %v551 = vpop.f32.mrf.mxu0
    %v552 = vadd.f32 0.0, %v551
    %v553 = vpop.f32.mrf.mxu0
    %v554 = vadd.f32 0.0, %v553
    %555 = vmatmul.bf16.gmra.mxu0 %v343
    %v556 = vpop.f32.mrf.mxu0
    %v557 = vadd.f32 0.0, %v556
    %v558 = vpop.f32.mrf.mxu0
    %v559 = vadd.f32 0.0, %v558
    %560 = vdwg.mxu0
    %v561 = vrot.slane %v514, 7
    %v562 = vrot.slane %v516, 7
    %v563 = vrot.slane %v519, 7
    %v564 = vrot.slane %v521, 7
    %v565 = vsel %vm284, %v563, %v564
    %v566 = vsel %vm284, %v562, %v563
    %v567 = vsel %vm284, %v561, %v562
    %v568 = vsel %vm284, %v564, %v561
    %v569 = vsel %vm293, %v568, 0.0
    %v570 = vsel %vm294, %v567, 0.0
    %v571 = vsel %vm295, %v566, 0.0
    %v572 = vsel %vm296, %v565, 0.0
    %v573 = vrot.slane %v552, 1
    %v574 = vrot.slane %v554, 1
    %v575 = vrot.slane %v557, 1
    %v576 = vrot.slane %v559, 1
    %v577 = vsel %vm305, %v575, %v576
    %v578 = vsel %vm305, %v574, %v575
    %v579 = vsel %vm305, %v573, %v574
    %v580 = vsel %vm305, %v576, %v573
    %v581 = vsel %vm314, %v579, 0.0
    %v582 = vsel %vm315, %v578, 0.0
    %v583 = vsel %vm316, %v577, 0.0
    %v584 = vsel %vm317, %v580, 0.0
    %v585 = vadd.f32 %v533, %v569
    %v586 = vadd.f32 %v535, %v570
    %v587 = vadd.f32 %v538, %v571
    %v588 = vadd.f32 %v540, %v572
    %v589 = vadd.f32 %v585, %v581
    %v590 = vadd.f32 %v586, %v582
    %v591 = vadd.f32 %v587, %v583
    %v592 = vadd.f32 %v588, %v584
    %v593 = vld [vmem:[%s4] sm:$0x1]
    %v595 = vperm.slane %v593, 0
    %v597 = vadd.f32 %v589, %v595
    %v598 = vadd.f32 %v590, %v595
    %v599 = vadd.f32 %v591, %v595
    %v600 = vadd.f32 %v592, %v595
    %v601 = vmax.f32 %v597, 0.0
    %v602 = vmax.f32 %v598, 0.0
    %v603 = vmax.f32 %v599, 0.0
    %v604 = vmax.f32 %v600, 0.0
    %605 = vst [vmem:[#allocation8] sm:$0xff] %v601
    %606 = vst [vmem:[#allocation8 + $0x8] sm:$0xff] %v602
    %607 = vst [vmem:[#allocation8 + $0x10] sm:$0xff] %v603
    %608 = vst [vmem:[#allocation8 + $0x18] sm:$0xff] %v604
    // Predicated region
    $region34: #{tpu_custom_call.1} parent=1 // pred_check
      _
    $region35: #{tpu_custom_call.1} parent=1 // pred_check_branch
      %610 = sbr.rel (0) target = $region37
    $region36: #{tpu_custom_call.1} parent=1 // pred_region
      %612 = vsyncadd [#allocation4], 0
      %s613 = sshll.u32 [#allocation8], 4
      %s614 = int_to_ptr.vmem [resolvable:$true] %s613
      %s615 = sshll.u32 %s5, 4
      %s616 = int_to_ptr.hbm [resolvable:$true] %s615
      %621 = dma.vmem_to_hbm [thread:$0]  %s614, 512, %s616, [#allocation4], 128, 128, 8
    $region37: #{tpu_custom_call.1} parent=1 // pred_fallthru
      _
    // Predicated region
    $region38: #{tpu_custom_call.1} parent=1 // pred_check
      _
    $region39: #{tpu_custom_call.1} parent=1 // pred_check_branch
      %623 = sbr.rel (0) target = $region41
    $region40: #{tpu_custom_call.1} parent=1 // pred_region
      %625 = dma.done [#allocation4], 512
    $region41: #{tpu_custom_call.1} parent=1 // pred_fallthru
      _
    %626 = vsyncpa [#allocation3], 1
    %627 = vsyncpa [#allocation6], 1
    %628 = vsyncpa [#allocation4], 1

</llo_original>
